<compile_context>
chip_gen: v7x
topology: tpu7x:2x2x1
jax: 0.10.0
libtpu: 0.0.40
codegen_flags: <defaults>
</compile_context>

<pallas_src>
import functools
import math

import jax
import jax.numpy as jnp
from jax.experimental import pallas as pl
from jax.experimental.pallas import tpu as pltpu

_LANE = 128


def _diffusion_loss_kernel(
    alpha_ref, sigma_ref, be_ref, w1_ref, w2_ref,   # scalar-prefetch (SMEM)
    x0_ref, xcond_ref, noise_ref,                   # (1, C, TR, 128) VMEM tiles (raw inputs)
    out_ref,                                        # (1, 1, 128) per-batch output tile
    loss_acc, mask_acc,                             # (TR, 128) VMEM vector accumulators
    *, channels,
):
    b = pl.program_id(0)
    si = pl.program_id(1)

    @pl.when(si == 0)
    def _():
        loss_acc[...] = jnp.zeros_like(loss_acc)
        mask_acc[...] = jnp.zeros_like(mask_acc)

    alpha = alpha_ref[b]
    sigma = sigma_ref[b]

    # Per-channel dense (TR, 128) slabs.
    xc_raw = [xcond_ref[0, c] for c in range(channels)]
    x0_raw = [x0_ref[0, c] for c in range(channels)]
    nz = [noise_ref[0, c] for c in range(channels)]

    # mask = (x_cond == 0.0), computed on RAW x_cond (before normalize)
    m = [(xc == 0.0).astype(jnp.float32) for xc in xc_raw]
    # normalize(x) = 2x - 1
    xcn = [xc * 2.0 - 1.0 for xc in xc_raw]

    # q_sample + mask merge
    xmix = []
    for c in range(channels):
        xq = (x0_raw[c] * 2.0 - 1.0) * alpha + nz[c] * sigma
        xmix.append(xq * m[c] + xcn[c] * (1.0 - m[c]))

    # synthetic denoise_fn: pointwise (1x1x1) conv over concat([x_cond, x]) plus
    # precomputed log-SNR conditioning (bias_eff).  C is tiny & static, so this
    # is a handful of scalar*vector VPU FMAs -- no MXU involvement.
    loss_part = None
    mask_part = None
    for o in range(channels):
        nh = xcn[0] * w1_ref[o, 0] + xmix[0] * w2_ref[o, 0]
        for c in range(1, channels):
            nh = nh + xcn[c] * w1_ref[o, c] + xmix[c] * w2_ref[o, c]
        nh = nh + be_ref[b, o]
        d = nh - nz[o]
        contrib = d * d * m[o]
        loss_part = contrib if loss_part is None else loss_part + contrib
        mask_part = m[o] if mask_part is None else mask_part + m[o]

    # vector accumulation (no cross-lane work in the steady state)
    loss_acc[...] += loss_part
    mask_acc[...] += mask_part

    @pl.when(si == pl.num_programs(1) - 1)
    def _():
        total_loss = jnp.sum(loss_acc[...])
        total_mask = jnp.sum(mask_acc[...])
        val = total_loss / (total_mask + 1e-8)
        out_ref[...] = jnp.full(out_ref.shape, val, dtype=jnp.float32)


def _pick_tile_rows(rows, channels, max_block_bytes=2 << 20, target_rows=1024):
    """Largest multiple-of-8 divisor of `rows` under a per-input block budget."""
    cap = max(8, max_block_bytes // (channels * _LANE * 4))
    target = min(target_rows, cap, rows)
    if rows <= target:
        return rows
    t = (target // 8) * 8
    while t >= 8:
        if rows % t == 0:
            return t
        t -= 8
    return rows  # fallback: whole axis (always a legal block)


def continuous_time_diffusion_loss(x0, x_cond, noise, times, w1, w2, bias, tw,
                                   *, tile_rows=None):
    """Forward pass of ContinuousTimeGaussianDiffusion (loss_type='l2',
    min_snr_loss_weight=False).  x0 / x_cond / noise: (B, C, N) float32 with
    N = frames*H*W and N % 128 == 0.  Returns losses_masked of shape (B, 1)."""
    B, C, N = x0.shape
    assert N % _LANE == 0
    rows = N // _LANE

    # per-batch scalar schedule (cosine log-SNR) + hoisted conditioning term
    s = 0.008
    log_snr = -jnp.log(
        jnp.maximum(jnp.cos((times + s) / (1 + s) * math.pi * 0.5) ** (-2) - 1.0,
                    1e-5))
    alpha = jnp.sqrt(jax.nn.sigmoid(log_snr))
    sigma = jnp.sqrt(jax.nn.sigmoid(-log_snr))
    bias_eff = bias[None, :] + log_snr[:, None] * tw[None, :]   # (B, C)

    if tile_rows is None:
        tile_rows = _pick_tile_rows(rows, C)
    assert rows % tile_rows == 0
    n_tiles = rows // tile_rows

    # dense lane-major layout: (B, C, rows, 128)  (free reshape in row-major)
    x0r = x0.reshape(B, C, rows, _LANE)
    xcr = x_cond.reshape(B, C, rows, _LANE)
    nzr = noise.reshape(B, C, rows, _LANE)

    data_spec = pl.BlockSpec((1, C, tile_rows, _LANE),
                             lambda b, si, *_: (b, 0, si, 0))
    out_spec = pl.BlockSpec((1, 1, _LANE), lambda b, si, *_: (b, 0, 0))

    # explicit scoped-VMEM budget: 3 inputs x 2 buffers + accumulators + margin
    block_bytes = C * tile_rows * _LANE * 4
    vmem_bytes = 3 * 2 * block_bytes + 2 * tile_rows * _LANE * 4 + 2 * _LANE * 4
    vmem_bytes = int(min(max(vmem_bytes + (4 << 20), 8 << 20), 32 << 20))

    kernel = functools.partial(_diffusion_loss_kernel, channels=C)

    out = pl.pallas_call(
        kernel,
        out_shape=jax.ShapeDtypeStruct((B, 1, _LANE), jnp.float32),
        grid_spec=pltpu.PrefetchScalarGridSpec(
            num_scalar_prefetch=5,
            grid=(B, n_tiles),
            in_specs=[data_spec, data_spec, data_spec],
            out_specs=out_spec,
            scratch_shapes=[pltpu.VMEM((tile_rows, _LANE), jnp.float32),
                            pltpu.VMEM((tile_rows, _LANE), jnp.float32)],
        ),
        compiler_params=pltpu.CompilerParams(
            dimension_semantics=("parallel", "arbitrary"),
            vmem_limit_bytes=vmem_bytes),
    )(alpha, sigma, bias_eff, w1, w2, x0r, xcr, nzr)

    return out[:, 0, 0:1]   # (B, 1) == losses_masked


def _reference(x0, x_cond, times, noise, w1, w2, bias, tw):
    """Plain-JAX reference of the same forward pass, for validation."""
    s = 0.008
    log_snr = -jnp.log(
        jnp.maximum(jnp.cos((times + s) / (1 + s) * math.pi * 0.5) ** (-2) - 1.0,
                    1e-5))
    alpha = jnp.sqrt(jax.nn.sigmoid(log_snr))[:, None, None]
    sigma = jnp.sqrt(jax.nn.sigmoid(-log_snr))[:, None, None]
    m = (x_cond == 0.0).astype(jnp.float32)
    x0n = x0 * 2.0 - 1.0
    xcn = x_cond * 2.0 - 1.0
    x = x0n * alpha + noise * sigma
    x = x * m + xcn * (1.0 - m)
    noise_hat = (jnp.einsum('oc,bcn->bon', w1, xcn)
                 + jnp.einsum('oc,bcn->bon', w2, x)
                 + bias[None, :, None]
                 + log_snr[:, None, None] * tw[None, :, None])
    losses = (noise_hat - noise) ** 2
    lm = jnp.sum(losses * m, axis=(1, 2))[:, None]
    ms = jnp.sum(m, axis=(1, 2))[:, None]
    return lm / (ms + 1e-8)


if __name__ == "__main__":
    # small shapes consistent with the module: batch=2, channels=2 (module
    # default), frames=4, image_size=32  ->  x_0 / x_cond: (2, 2, 4, 32, 32)
    B, C, F_, H, W = 2, 2, 4, 32, 32
    N = F_ * H * W  # 4096 -> 32 rows of 128 lanes

    key = jax.random.PRNGKey(0)
    k1, k2, k3, k4, k5, k6, k7 = jax.random.split(key, 7)

    x0_nchw = jax.random.uniform(k1, (B, C, F_, H, W), dtype=jnp.float32)
    x_cond_nchw = jax.random.uniform(k2, (B, C, F_, H, W), dtype=jnp.float32)
    # zero out half of the width so mask = (x_cond == 0) is non-trivial
    zero_cols = (jnp.arange(W) < W // 2)[None, None, None, None, :]
    x_cond_nchw = jnp.where(zero_cols, 0.0, x_cond_nchw)

    # flatten NCFHW -> (B, C, N)
    x0 = x0_nchw.reshape(B, C, N)
    x_cond = x_cond_nchw.reshape(B, C, N)

    # randomness that the torch module draws internally (random_times, randn_like)
    # TODO(synk): torch's in-module RNG has no Pallas equivalent; drawn here with jax.random.
    times = jax.random.uniform(k3, (B,), dtype=jnp.float32)
    noise = jax.random.normal(k4, (B, C, N), dtype=jnp.float32)

    # deterministic synthetic denoise_fn parameters (2C -> C pointwise conv + time cond.)
    # TODO(synk): the real denoise_fn is an external nn.Module; this 1x1x1-conv
    # surrogate stands in for it so the diffusion math around it can be fused.
    w_full = 0.1 * jax.random.normal(k5, (C, 2 * C), dtype=jnp.float32)
    w1, w2 = w_full[:, :C], w_full[:, C:]
    bias = 0.05 * jax.random.normal(k6, (C,), dtype=jnp.float32)
    tw = 0.01 * jax.random.normal(k7, (C,), dtype=jnp.float32)

    # tile_rows=8 forces multiple spatial tiles per batch, exercising the
    # accumulate / finalize path (default picker would use the full 32 rows).
    out = continuous_time_diffusion_loss(x0, x_cond, noise, times,
                                         w1, w2, bias, tw, tile_rows=8)
    out = jax.block_until_ready(out)

    ref = _reference(x0, x_cond, times, noise, w1, w2, bias, tw)
    assert out.shape == (B, 1)
    assert jnp.allclose(out, ref, rtol=2e-3, atol=1e-5), (out, ref)

    print("KERNEL_OK")
</pallas_src>

<mosaic_0001>
module attributes {stable_mosaic.version = 11 : i64} {
  func.func @_diffusion_loss_kernel(%arg0: i32, %arg1: i32, %arg2: memref<2xf32, #tpu.memory_space<smem>>, %arg3: memref<2xf32, #tpu.memory_space<smem>>, %arg4: memref<2x2xf32, #tpu.memory_space<smem>>, %arg5: memref<2x2xf32, #tpu.memory_space<smem>>, %arg6: memref<2x2xf32, #tpu.memory_space<smem>>, %arg7: memref<1x2x8x128xf32, #tpu.memory_space<vmem>>, %arg8: memref<1x2x8x128xf32, #tpu.memory_space<vmem>>, %arg9: memref<1x2x8x128xf32, #tpu.memory_space<vmem>>, %arg10: memref<1x1x128xf32, #tpu.memory_space<vmem>>, %arg11: memref<8x128xf32, #tpu.memory_space<vmem>>, %arg12: memref<8x128xf32, #tpu.memory_space<vmem>>) attributes {dimension_semantics = [#tpu.dimension_semantics<parallel>, #tpu.dimension_semantics<arbitrary>], iteration_bounds = array<i64: 2, 4>, scalar_prefetch = 5 : i64, scratch_operands = 2 : i64, tpu.core_type = #tpu.core_type<tc>, window_params = [{transform_indices = @transform_0, window_bounds = array<i64: 1, 2, 8, 128>}, {transform_indices = @transform_1, window_bounds = array<i64: 1, 2, 8, 128>}, {transform_indices = @transform_2, window_bounds = array<i64: 1, 2, 8, 128>}, {transform_indices = @transform_3, window_bounds = array<i64: 1, 1, 128>}]} {
    %c0_i32 = arith.constant 0 : i32
    %0 = arith.cmpi eq, %arg1, %c0_i32 : i32
    %1 = arith.extui %0 : i1 to i32
    %c0_i32_0 = arith.constant 0 : i32
    %2 = arith.cmpi ne, %1, %c0_i32_0 : i32
    scf.if %2 {
      %cst_61 = arith.constant 0.000000e+00 : f32
      %118 = vector.broadcast %cst_61 : f32 to vector<8x128xf32>
      %c0_62 = arith.constant 0 : index
      %c0_63 = arith.constant 0 : index
      %119 = vector.load %arg11[%c0_62, %c0_63] : memref<8x128xf32, #tpu.memory_space<vmem>>, vector<8x128xf32>
      tpu.vector_store %arg11[%c0_62, %c0_63], %118 {strides = array<i32>} : memref<8x128xf32, #tpu.memory_space<vmem>>, vector<8x128xf32>,
      %cst_64 = arith.constant 0.000000e+00 : f32
      %120 = vector.broadcast %cst_64 : f32 to vector<8x128xf32>
      %c0_65 = arith.constant 0 : index
      %c0_66 = arith.constant 0 : index
      %121 = vector.load %arg12[%c0_65, %c0_66] : memref<8x128xf32, #tpu.memory_space<vmem>>, vector<8x128xf32>
      tpu.vector_store %arg12[%c0_65, %c0_66], %120 {strides = array<i32>} : memref<8x128xf32, #tpu.memory_space<vmem>>, vector<8x128xf32>,
    } else {
    }
    %3 = arith.index_cast %arg0 : i32 to index
    %4 = memref.load %arg2[%3] : memref<2xf32, #tpu.memory_space<smem>>
    %5 = arith.index_cast %arg0 : i32 to index
    %6 = memref.load %arg3[%5] : memref<2xf32, #tpu.memory_space<smem>>
    %c0 = arith.constant 0 : index
    %c0_1 = arith.constant 0 : index
    %c0_2 = arith.constant 0 : index
    %c0_3 = arith.constant 0 : index
    %7 = vector.load %arg8[%c0, %c0_1, %c0_2, %c0_3] : memref<1x2x8x128xf32, #tpu.memory_space<vmem>>, vector<1x1x8x128xf32>
    %8 = vector.shape_cast %7 : vector<1x1x8x128xf32> to vector<8x128xf32>
    %c0_4 = arith.constant 0 : index
    %c1 = arith.constant 1 : index
    %c0_5 = arith.constant 0 : index
    %c0_6 = arith.constant 0 : index
    %9 = vector.load %arg8[%c0_4, %c1, %c0_5, %c0_6] : memref<1x2x8x128xf32, #tpu.memory_space<vmem>>, vector<1x1x8x128xf32>
    %10 = vector.shape_cast %9 : vector<1x1x8x128xf32> to vector<8x128xf32>
    %c0_7 = arith.constant 0 : index
    %c0_8 = arith.constant 0 : index
    %c0_9 = arith.constant 0 : index
    %c0_10 = arith.constant 0 : index
    %11 = vector.load %arg7[%c0_7, %c0_8, %c0_9, %c0_10] : memref<1x2x8x128xf32, #tpu.memory_space<vmem>>, vector<1x1x8x128xf32>
    %12 = vector.shape_cast %11 : vector<1x1x8x128xf32> to vector<8x128xf32>
    %c0_11 = arith.constant 0 : index
    %c1_12 = arith.constant 1 : index
    %c0_13 = arith.constant 0 : index
    %c0_14 = arith.constant 0 : index
    %13 = vector.load %arg7[%c0_11, %c1_12, %c0_13, %c0_14] : memref<1x2x8x128xf32, #tpu.memory_space<vmem>>, vector<1x1x8x128xf32>
    %14 = vector.shape_cast %13 : vector<1x1x8x128xf32> to vector<8x128xf32>
    %c0_15 = arith.constant 0 : index
    %c0_16 = arith.constant 0 : index
    %c0_17 = arith.constant 0 : index
    %c0_18 = arith.constant 0 : index
    %15 = vector.load %arg9[%c0_15, %c0_16, %c0_17, %c0_18] : memref<1x2x8x128xf32, #tpu.memory_space<vmem>>, vector<1x1x8x128xf32>
    %16 = vector.shape_cast %15 : vector<1x1x8x128xf32> to vector<8x128xf32>
    %c0_19 = arith.constant 0 : index
    %c1_20 = arith.constant 1 : index
    %c0_21 = arith.constant 0 : index
    %c0_22 = arith.constant 0 : index
    %17 = vector.load %arg9[%c0_19, %c1_20, %c0_21, %c0_22] : memref<1x2x8x128xf32, #tpu.memory_space<vmem>>, vector<1x1x8x128xf32>
    %18 = vector.shape_cast %17 : vector<1x1x8x128xf32> to vector<8x128xf32>
    %cst = arith.constant 0.000000e+00 : f32
    %19 = vector.broadcast %cst : f32 to vector<8x128xf32>
    %20 = arith.cmpf oeq, %8, %19 : vector<8x128xf32>
    %21 = arith.extui %20 : vector<8x128xi1> to vector<8x128xi32>
    %22 = arith.sitofp %21 : vector<8x128xi32> to vector<8x128xf32>
    %cst_23 = arith.constant 0.000000e+00 : f32
    %23 = vector.broadcast %cst_23 : f32 to vector<8x128xf32>
    %24 = arith.cmpf oeq, %10, %23 : vector<8x128xf32>
    %25 = arith.extui %24 : vector<8x128xi1> to vector<8x128xi32>
    %26 = arith.sitofp %25 : vector<8x128xi32> to vector<8x128xf32>
    %cst_24 = arith.constant 2.000000e+00 : f32
    %27 = vector.broadcast %cst_24 : f32 to vector<8x128xf32>
    %28 = arith.mulf %8, %27 : vector<8x128xf32>
    %cst_25 = arith.constant 1.000000e+00 : f32
    %29 = vector.broadcast %cst_25 : f32 to vector<8x128xf32>
    %30 = arith.subf %28, %29 : vector<8x128xf32>
    %cst_26 = arith.constant 2.000000e+00 : f32
    %31 = vector.broadcast %cst_26 : f32 to vector<8x128xf32>
    %32 = arith.mulf %10, %31 : vector<8x128xf32>
    %cst_27 = arith.constant 1.000000e+00 : f32
    %33 = vector.broadcast %cst_27 : f32 to vector<8x128xf32>
    %34 = arith.subf %32, %33 : vector<8x128xf32>
    %cst_28 = arith.constant 2.000000e+00 : f32
    %35 = vector.broadcast %cst_28 : f32 to vector<8x128xf32>
    %36 = arith.mulf %12, %35 : vector<8x128xf32>
    %cst_29 = arith.constant 1.000000e+00 : f32
    %37 = vector.broadcast %cst_29 : f32 to vector<8x128xf32>
    %38 = arith.subf %36, %37 : vector<8x128xf32>
    %39 = vector.broadcast %4 : f32 to vector<8x128xf32>
    %40 = arith.mulf %38, %39 : vector<8x128xf32>
    %41 = vector.broadcast %6 : f32 to vector<8x128xf32>
    %42 = arith.mulf %16, %41 : vector<8x128xf32>
    %43 = arith.addf %40, %42 : vector<8x128xf32>
    %44 = arith.mulf %43, %22 : vector<8x128xf32>
    %cst_30 = arith.constant 1.000000e+00 : f32
    %45 = vector.broadcast %cst_30 : f32 to vector<8x128xf32>
    %46 = arith.subf %45, %22 : vector<8x128xf32>
    %47 = arith.mulf %30, %46 : vector<8x128xf32>
    %48 = arith.addf %44, %47 : vector<8x128xf32>
    %cst_31 = arith.constant 2.000000e+00 : f32
    %49 = vector.broadcast %cst_31 : f32 to vector<8x128xf32>
    %50 = arith.mulf %14, %49 : vector<8x128xf32>
    %cst_32 = arith.constant 1.000000e+00 : f32
    %51 = vector.broadcast %cst_32 : f32 to vector<8x128xf32>
    %52 = arith.subf %50, %51 : vector<8x128xf32>
    %53 = vector.broadcast %4 : f32 to vector<8x128xf32>
    %54 = arith.mulf %52, %53 : vector<8x128xf32>
    %55 = vector.broadcast %6 : f32 to vector<8x128xf32>
    %56 = arith.mulf %18, %55 : vector<8x128xf32>
    %57 = arith.addf %54, %56 : vector<8x128xf32>
    %58 = arith.mulf %57, %26 : vector<8x128xf32>
    %cst_33 = arith.constant 1.000000e+00 : f32
    %59 = vector.broadcast %cst_33 : f32 to vector<8x128xf32>
    %60 = arith.subf %59, %26 : vector<8x128xf32>
    %61 = arith.mulf %34, %60 : vector<8x128xf32>
    %62 = arith.addf %58, %61 : vector<8x128xf32>
    %c0_34 = arith.constant 0 : index
    %c0_35 = arith.constant 0 : index
    %63 = memref.load %arg5[%c0_34, %c0_35] : memref<2x2xf32, #tpu.memory_space<smem>>
    %64 = vector.broadcast %63 : f32 to vector<8x128xf32>
    %65 = arith.mulf %30, %64 : vector<8x128xf32>
    %c0_36 = arith.constant 0 : index
    %c0_37 = arith.constant 0 : index
    %66 = memref.load %arg6[%c0_36, %c0_37] : memref<2x2xf32, #tpu.memory_space<smem>>
    %67 = vector.broadcast %66 : f32 to vector<8x128xf32>
    %68 = arith.mulf %48, %67 : vector<8x128xf32>
    %69 = arith.addf %65, %68 : vector<8x128xf32>
    %c0_38 = arith.constant 0 : index
    %c1_39 = arith.constant 1 : index
    %70 = memref.load %arg5[%c0_38, %c1_39] : memref<2x2xf32, #tpu.memory_space<smem>>
    %71 = vector.broadcast %70 : f32 to vector<8x128xf32>
    %72 = arith.mulf %34, %71 : vector<8x128xf32>
    %73 = arith.addf %69, %72 : vector<8x128xf32>
    %c0_40 = arith.constant 0 : index
    %c1_41 = arith.constant 1 : index
    %74 = memref.load %arg6[%c0_40, %c1_41] : memref<2x2xf32, #tpu.memory_space<smem>>
    %75 = vector.broadcast %74 : f32 to vector<8x128xf32>
    %76 = arith.mulf %62, %75 : vector<8x128xf32>
    %77 = arith.addf %73, %76 : vector<8x128xf32>
    %78 = arith.index_cast %arg0 : i32 to index
    %c0_42 = arith.constant 0 : index
    %79 = memref.load %arg4[%78, %c0_42] : memref<2x2xf32, #tpu.memory_space<smem>>
    %80 = vector.broadcast %79 : f32 to vector<8x128xf32>
    %81 = arith.addf %77, %80 : vector<8x128xf32>
    %82 = arith.subf %81, %16 : vector<8x128xf32>
    %83 = arith.mulf %82, %82 : vector<8x128xf32>
    %84 = arith.mulf %83, %22 : vector<8x128xf32>
    %c1_43 = arith.constant 1 : index
    %c0_44 = arith.constant 0 : index
    %85 = memref.load %arg5[%c1_43, %c0_44] : memref<2x2xf32, #tpu.memory_space<smem>>
    %86 = vector.broadcast %85 : f32 to vector<8x128xf32>
    %87 = arith.mulf %30, %86 : vector<8x128xf32>
    %c1_45 = arith.constant 1 : index
    %c0_46 = arith.constant 0 : index
    %88 = memref.load %arg6[%c1_45, %c0_46] : memref<2x2xf32, #tpu.memory_space<smem>>
    %89 = vector.broadcast %88 : f32 to vector<8x128xf32>
    %90 = arith.mulf %48, %89 : vector<8x128xf32>
    %91 = arith.addf %87, %90 : vector<8x128xf32>
    %c1_47 = arith.constant 1 : index
    %c1_48 = arith.constant 1 : index
    %92 = memref.load %arg5[%c1_47, %c1_48] : memref<2x2xf32, #tpu.memory_space<smem>>
    %93 = vector.broadcast %92 : f32 to vector<8x128xf32>
    %94 = arith.mulf %34, %93 : vector<8x128xf32>
    %95 = arith.addf %91, %94 : vector<8x128xf32>
    %c1_49 = arith.constant 1 : index
    %c1_50 = arith.constant 1 : index
    %96 = memref.load %arg6[%c1_49, %c1_50] : memref<2x2xf32, #tpu.memory_space<smem>>
    %97 = vector.broadcast %96 : f32 to vector<8x128xf32>
    %98 = arith.mulf %62, %97 : vector<8x128xf32>
    %99 = arith.addf %95, %98 : vector<8x128xf32>
    %100 = arith.index_cast %arg0 : i32 to index
    %c1_51 = arith.constant 1 : index
    %101 = memref.load %arg4[%100, %c1_51] : memref<2x2xf32, #tpu.memory_space<smem>>
    %102 = vector.broadcast %101 : f32 to vector<8x128xf32>
    %103 = arith.addf %99, %102 : vector<8x128xf32>
    %104 = arith.subf %103, %18 : vector<8x128xf32>
    %105 = arith.mulf %104, %104 : vector<8x128xf32>
    %106 = arith.mulf %105, %26 : vector<8x128xf32>
    %107 = arith.addf %84, %106 : vector<8x128xf32>
    %108 = arith.addf %22, %26 : vector<8x128xf32>
    %c0_52 = arith.constant 0 : index
    %c0_53 = arith.constant 0 : index
    %109 = vector.load %arg11[%c0_52, %c0_53] : memref<8x128xf32, #tpu.memory_space<vmem>>, vector<8x128xf32>
    %110 = arith.addf %109, %107 : vector<8x128xf32>
    %c0_54 = arith.constant 0 : index
    %c0_55 = arith.constant 0 : index
    %111 = vector.load %arg11[%c0_54, %c0_55] : memref<8x128xf32, #tpu.memory_space<vmem>>, vector<8x128xf32>
    tpu.vector_store %arg11[%c0_54, %c0_55], %110 {strides = array<i32>} : memref<8x128xf32, #tpu.memory_space<vmem>>, vector<8x128xf32>,
    %c0_56 = arith.constant 0 : index
    %c0_57 = arith.constant 0 : index
    %112 = vector.load %arg12[%c0_56, %c0_57] : memref<8x128xf32, #tpu.memory_space<vmem>>, vector<8x128xf32>
    %113 = arith.addf %112, %108 : vector<8x128xf32>
    %c0_58 = arith.constant 0 : index
    %c0_59 = arith.constant 0 : index
    %114 = vector.load %arg12[%c0_58, %c0_59] : memref<8x128xf32, #tpu.memory_space<vmem>>, vector<8x128xf32>
    tpu.vector_store %arg12[%c0_58, %c0_59], %113 {strides = array<i32>} : memref<8x128xf32, #tpu.memory_space<vmem>>, vector<8x128xf32>,
    %c3_i32 = arith.constant 3 : i32
    %115 = arith.cmpi eq, %arg1, %c3_i32 : i32
    %116 = arith.extui %115 : i1 to i32
    %c0_i32_60 = arith.constant 0 : i32
    %117 = arith.cmpi ne, %116, %c0_i32_60 : i32
    scf.if %117 {
      %c0_61 = arith.constant 0 : index
      %c0_62 = arith.constant 0 : index
      %118 = vector.load %arg11[%c0_61, %c0_62] : memref<8x128xf32, #tpu.memory_space<vmem>>, vector<8x128xf32>
      %119 = vector.shape_cast %118 : vector<8x128xf32> to vector<1x8x128xf32>
      %cst_63 = arith.constant dense<0.000000e+00> : vector<1xf32>
      %120 = vector.multi_reduction <add>, %119, %cst_63 [1, 2] : vector<1x8x128xf32> to vector<1xf32>
      %121 = vector.shape_cast %120 : vector<1xf32> to vector<1x1x1xf32>
      %122 = vector.extract %121[0, 0, 0] : f32 from vector<1x1x1xf32>
      %c0_64 = arith.constant 0 : index
      %c0_65 = arith.constant 0 : index
      %123 = vector.load %arg12[%c0_64, %c0_65] : memref<8x128xf32, #tpu.memory_space<vmem>>, vector<8x128xf32>
      %124 = vector.shape_cast %123 : vector<8x128xf32> to vector<1x8x128xf32>
      %cst_66 = arith.constant dense<0.000000e+00> : vector<1xf32>
      %125 = vector.multi_reduction <add>, %124, %cst_66 [1, 2] : vector<1x8x128xf32> to vector<1xf32>
      %126 = vector.shape_cast %125 : vector<1xf32> to vector<1x1x1xf32>
      %127 = vector.extract %126[0, 0, 0] : f32 from vector<1x1x1xf32>
      %cst_67 = arith.constant 9.99999993E-9 : f32
      %128 = arith.addf %127, %cst_67 : f32
      %129 = arith.divf %122, %128 : f32
      %130 = vector.broadcast %129 : f32 to vector<1x1x128xf32>
      %c0_68 = arith.constant 0 : index
      %c0_69 = arith.constant 0 : index
      %c0_70 = arith.constant 0 : index
      %131 = vector.load %arg10[%c0_68, %c0_69, %c0_70] : memref<1x1x128xf32, #tpu.memory_space<vmem>>, vector<1x1x128xf32>
      tpu.vector_store %arg10[%c0_68, %c0_69, %c0_70], %130 {strides = array<i32>} : memref<1x1x128xf32, #tpu.memory_space<vmem>>, vector<1x1x128xf32>,
    } else {
    }
    return
  }
  func.func @transform_0(%arg0: i32, %arg1: i32, %arg2: memref<2xf32, #tpu.memory_space<smem>>, %arg3: memref<2xf32, #tpu.memory_space<smem>>, %arg4: memref<2x2xf32, #tpu.memory_space<smem>>, %arg5: memref<2x2xf32, #tpu.memory_space<smem>>, %arg6: memref<2x2xf32, #tpu.memory_space<smem>>) -> (i32, i32, i32, i32) {
    %c0_i32 = arith.constant 0 : i32
    %c0_i32_0 = arith.constant 0 : i32
    %c0_i32_1 = arith.constant 0 : i32
    return %arg0, %c0_i32, %arg1, %c0_i32_0 : i32, i32, i32, i32
  }
  func.func @transform_1(%arg0: i32, %arg1: i32, %arg2: memref<2xf32, #tpu.memory_space<smem>>, %arg3: memref<2xf32, #tpu.memory_space<smem>>, %arg4: memref<2x2xf32, #tpu.memory_space<smem>>, %arg5: memref<2x2xf32, #tpu.memory_space<smem>>, %arg6: memref<2x2xf32, #tpu.memory_space<smem>>) -> (i32, i32, i32, i32) {
    %c0_i32 = arith.constant 0 : i32
    %c0_i32_0 = arith.constant 0 : i32
    %c0_i32_1 = arith.constant 0 : i32
    return %arg0, %c0_i32, %arg1, %c0_i32_0 : i32, i32, i32, i32
  }
  func.func @transform_2(%arg0: i32, %arg1: i32, %arg2: memref<2xf32, #tpu.memory_space<smem>>, %arg3: memref<2xf32, #tpu.memory_space<smem>>, %arg4: memref<2x2xf32, #tpu.memory_space<smem>>, %arg5: memref<2x2xf32, #tpu.memory_space<smem>>, %arg6: memref<2x2xf32, #tpu.memory_space<smem>>) -> (i32, i32, i32, i32) {
    %c0_i32 = arith.constant 0 : i32
    %c0_i32_0 = arith.constant 0 : i32
    %c0_i32_1 = arith.constant 0 : i32
    return %arg0, %c0_i32, %arg1, %c0_i32_0 : i32, i32, i32, i32
  }
  func.func @transform_3(%arg0: i32, %arg1: i32, %arg2: memref<2xf32, #tpu.memory_space<smem>>, %arg3: memref<2xf32, #tpu.memory_space<smem>>, %arg4: memref<2x2xf32, #tpu.memory_space<smem>>, %arg5: memref<2x2xf32, #tpu.memory_space<smem>>, %arg6: memref<2x2xf32, #tpu.memory_space<smem>>) -> (i32, i32, i32) {
    %c0_i32 = arith.constant 0 : i32
    %c0_i32_0 = arith.constant 0 : i32
    %c0_i32_1 = arith.constant 0 : i32
    return %arg0, %c0_i32, %c0_i32_0 : i32, i32, i32
  }
}

</mosaic_0001>

<llo_original>
// kernel: tpu_custom_call.1
$region0: #{tpu_custom_call.1}
  #allocation0 [shape = 'u32[]', space=smem, size = 0x4, offset = 0x4, fixed_abs, tag = 'smem constant byte address 0x4 - core index']
  #allocation1 [shape = 'u32[144,128]{1,0:T(1,128)}', space=vmem, size = 0x12000, scoped, tag = 'internal scratch']
  #allocation2 [shape = 'f32[8,128]{1,0:T(8,128)}', space=vmem, size = 0x1000, scoped, tag = 'scratch operand']
  #allocation3 [shape = 'f32[8,128]{1,0:T(8,128)}', space=vmem, size = 0x1000, scoped, tag = 'scratch operand']
  #allocation4 [shape = 's32[1]{0}', space=sflag, size = 0x4, scoped, tag = 'scoped memory for tpu_custom_call.1']
  #allocation5 [shape = 'u8[512]{0}', space=smem, size = 0x200, scoped, tag = 'prefetched SMEM operand 0']
  #allocation6 [shape = 'u8[512]{0}', space=smem, size = 0x200, scoped, tag = 'prefetched SMEM operand 1']
  #allocation7 [shape = 'u8[1024]{0}', space=smem, size = 0x400, scoped, tag = 'prefetched SMEM operand 2']
  #allocation8 [shape = 'u8[1024]{0}', space=smem, size = 0x400, scoped, tag = 'prefetched SMEM operand 3']
  #allocation9 [shape = 'u8[1024]{0}', space=smem, size = 0x400, scoped, tag = 'prefetched SMEM operand 4']
  %s0 = inlined_call_operand.hbm [shape: f32[2], index: 0, kind: input, shape index: {}]
  %s1 = inlined_call_operand.vmem [shape: f32[2], index: 1, kind: input, shape index: {}]
  %s2 = inlined_call_operand.vmem [shape: f32[2,2], index: 2, kind: input, shape index: {}]
  %s3 = inlined_call_operand.vmem [shape: f32[2,2], index: 3, kind: input, shape index: {}]
  %s4 = inlined_call_operand.vmem [shape: f32[2,2], index: 4, kind: input, shape index: {}]
  %s5 = inlined_call_operand.hbm [shape: f32[2,2,32,128], index: 5, kind: input, shape index: {}]
  %s6 = inlined_call_operand.hbm [shape: f32[2,2,32,128], index: 6, kind: input, shape index: {}]
  %s7 = inlined_call_operand.hbm [shape: f32[2,2,32,128], index: 7, kind: input, shape index: {}]
  %s8 = inlined_call_operand.hbm [shape: f32[2,1,128], index: 8, kind: output, shape index: {}]
  %s9 = sld [smem:[#allocation0]]
  $region65: #{tpu_custom_call.1} parent=0
    _
  %s11 = ssub.s32 1, %s9
  %s12 = scalar_select 0, %s11, %s9
  %14 = dma.hbm_to_smem %s0, 16, [#allocation5], [#allocation4]
  %s15 = sshll.u32 %s1, 4
  %s16 = int_to_ptr.vmem [resolvable:$true] %s15
  %18 = dma.vmem_to_smem %s16, 16, [#allocation6], [#allocation4]
  %s19 = sshll.u32 %s2, 4
  %s20 = int_to_ptr.vmem [resolvable:$true] %s19
  %22 = dma.vmem_to_smem %s20, 32, [#allocation7], [#allocation4]
  %s23 = sshll.u32 %s3, 4
  %s24 = int_to_ptr.vmem [resolvable:$true] %s23
  %26 = dma.vmem_to_smem %s24, 32, [#allocation8], [#allocation4]
  %s27 = sshll.u32 %s4, 4
  %s28 = int_to_ptr.vmem [resolvable:$true] %s27
  %30 = dma.vmem_to_smem %s28, 32, [#allocation9], [#allocation4]
  %31 = dma.done [#allocation4], 128
  %32 = sfence
  $region1: #{tpu_custom_call.1} parent=0
    #allocation10 [shape = 'u8[16384]{0}', space=vmem, size = 0x4000, scoped, tag = 'input window, operand 5']
    #allocation11 [shape = 's32[2]{0}', space=sflag, size = 0x8, scoped, tag = 'scoped memory for tpu_custom_call.1']
    #allocation12 [shape = 's32[2]{0}', space=sflag, size = 0x8, scoped, tag = 'scoped memory for tpu_custom_call.1']
    #allocation13 [shape = 'u8[16384]{0}', space=vmem, size = 0x4000, scoped, tag = 'input window, operand 6']
    #allocation14 [shape = 's32[2]{0}', space=sflag, size = 0x8, scoped, tag = 'scoped memory for tpu_custom_call.1']
    #allocation15 [shape = 'u8[16384]{0}', space=vmem, size = 0x4000, scoped, tag = 'input window, operand 7']
    #allocation16 [shape = 'u8[1024]{0}', space=vmem, size = 0x400, scoped, tag = 'output window, operand 0']
    %33 = vsyncpa [#allocation11], 0
    %s34 = scalar_lea.sflag [#allocation11], 1
    %35 = vsyncpa %s34, 0
    %36 = vsyncpa [#allocation14], 0
    %s37 = scalar_lea.sflag [#allocation14], 1
    %38 = vsyncpa %s37, 0
    %39 = vsyncpa [#allocation12], 0
    %s40 = scalar_lea.sflag [#allocation12], 1
    %41 = vsyncpa %s40, 0
    loop: start=0, step=1, limit=10
    $region2: #{tpu_custom_call.1} parent=1 // loop_pre_header
      _
    $region3: #{tpu_custom_call.1} parent=1 // loop_header
      %s43 = sphi 0, %s47
      %p44 = scmp.ge.s32.totalorder %s43, 10
      %s50 = sphi 0, %s62
      %s51 = sphi 0, %s58
      %s52 = sphi 0, %s50
      %s53 = sphi 0, %s51
      %s54 = sphi 0, %s52
      %s55 = sphi 0, %s53
      %s67 = sphi 0, %s69
      %s70 = sphi 0, %s67
      %s71 = sphi 0, %s70
      %s87 = sphi 0, %s71
      %s95 = sphi 0, %s97
      %s98 = sphi 0, %s95
      %s99 = sphi 0, %s98
      %s115 = sphi 0, %s99
      %s123 = sphi 0, %s125
      %s126 = sphi 0, %s123
      %s127 = sphi 0, %s126
      %s143 = sphi 0, %s127
      %s149 = sphi 0, %s151
      %s152 = sphi 0, %s149
      %s153 = sphi 0, %s152
      %s169 = sphi 0, %s153
    $region4: #{tpu_custom_call.1} parent=1 // loop_header_branch
      %46 = sbr.rel (%p44) target = $region8
    $region5: #{tpu_custom_call.1} parent=1 // loop_body
      %s48 = ssub.s32 %s43, 1
      %s49 = ssub.s32 %s43, 2
      %s56 = sadd.s32 1, %s51
      %p57 = scmp.ge.s32.totalorder %s56, 4
      %s58 = scalar_select %p57, 0, %s56
      %s59 = sadd.s32 1, %s50
      %s60 = scalar_select %p57, %s59, %s50
      %p61 = scmp.ge.s32.totalorder %s60, 2
      %s62 = scalar_select %p61, 0, %s60
      %s63 = ssub.s32 %s50, %s62
      %s64 = ssub.s32 %s51, %s58
      %s65 = sor.u32 %s63, %s64
      %p66 = scmp.eq.s32.totalorder %s65, 0
      %s68 = sadd.s32 %s67, 1
      %s69 = scalar_select %p66, %s67, %s68
      %p72 = pneg %p66
      %p73 = scmp.eq.s32.totalorder %s43, 7
      %p74 = por %p72, %p73
      %p75 = scmp.ne.s32.totalorder %s67, %s70
      %p76 = scmp.eq.s32.totalorder %s43, 0
      %p77 = por %p75, %p76
      %p78 = scmp.ne.s32.totalorder %s67, %s70
      %p79 = scmp.eq.s32.totalorder %s48, 7
      %p80 = por %p78, %p79
      %p81 = scmp.ne.s32.totalorder %s70, %s71
      %p82 = scmp.eq.s32.totalorder %s48, 0
      %p83 = por %p81, %p82
      %p84 = scmp.ne.s32.totalorder %s70, %s71
      %p85 = scmp.eq.s32.totalorder %s49, 7
      %p86 = por %p84, %p85
      %p88 = scmp.ne.s32.totalorder %s71, %s87
      %p89 = scmp.eq.s32.totalorder %s49, 0
      %p90 = por %p88, %p89
      %s91 = ssub.s32 %s50, %s62
      %s92 = ssub.s32 %s51, %s58
      %s93 = sor.u32 %s91, %s92
      %p94 = scmp.eq.s32.totalorder %s93, 0
      %s96 = sadd.s32 %s95, 1
      %s97 = scalar_select %p94, %s95, %s96
      %p100 = pneg %p94
      %p101 = scmp.eq.s32.totalorder %s43, 7
      %p102 = por %p100, %p101
      %p103 = scmp.ne.s32.totalorder %s95, %s98
      %p104 = scmp.eq.s32.totalorder %s43, 0
      %p105 = por %p103, %p104
      %p106 = scmp.ne.s32.totalorder %s95, %s98
      %p107 = scmp.eq.s32.totalorder %s48, 7
      %p108 = por %p106, %p107
      %p109 = scmp.ne.s32.totalorder %s98, %s99
      %p110 = scmp.eq.s32.totalorder %s48, 0
      %p111 = por %p109, %p110
      %p112 = scmp.ne.s32.totalorder %s98, %s99
      %p113 = scmp.eq.s32.totalorder %s49, 7
      %p114 = por %p112, %p113
      %p116 = scmp.ne.s32.totalorder %s99, %s115
      %p117 = scmp.eq.s32.totalorder %s49, 0
      %p118 = por %p116, %p117
      %s119 = ssub.s32 %s50, %s62
      %s120 = ssub.s32 %s51, %s58
      %s121 = sor.u32 %s119, %s120
      %p122 = scmp.eq.s32.totalorder %s121, 0
      %s124 = sadd.s32 %s123, 1
      %s125 = scalar_select %p122, %s123, %s124
      %p128 = pneg %p122
      %p129 = scmp.eq.s32.totalorder %s43, 7
      %p130 = por %p128, %p129
      %p131 = scmp.ne.s32.totalorder %s123, %s126
      %p132 = scmp.eq.s32.totalorder %s43, 0
      %p133 = por %p131, %p132
      %p134 = scmp.ne.s32.totalorder %s123, %s126
      %p135 = scmp.eq.s32.totalorder %s48, 7
      %p136 = por %p134, %p135
      %p137 = scmp.ne.s32.totalorder %s126, %s127
      %p138 = scmp.eq.s32.totalorder %s48, 0
      %p139 = por %p137, %p138
      %p140 = scmp.ne.s32.totalorder %s126, %s127
      %p141 = scmp.eq.s32.totalorder %s49, 7
      %p142 = por %p140, %p141
      %p144 = scmp.ne.s32.totalorder %s127, %s143
      %p145 = scmp.eq.s32.totalorder %s49, 0
      %p146 = por %p144, %p145
      %s147 = ssub.s32 %s50, %s62
      %p148 = scmp.eq.s32.totalorder %s147, 0
      %s150 = sadd.s32 %s149, 1
      %s151 = scalar_select %p148, %s149, %s150
      %p154 = pneg %p148
      %p155 = scmp.eq.s32.totalorder %s43, 7
      %p156 = por %p154, %p155
      %p157 = scmp.ne.s32.totalorder %s149, %s152
      %p158 = scmp.eq.s32.totalorder %s43, 0
      %p159 = por %p157, %p158
      %p160 = scmp.ne.s32.totalorder %s149, %s152
      %p161 = scmp.eq.s32.totalorder %s48, 7
      %p162 = por %p160, %p161
      %p163 = scmp.ne.s32.totalorder %s152, %s153
      %p164 = scmp.eq.s32.totalorder %s48, 0
      %p165 = por %p163, %p164
      %p166 = scmp.ne.s32.totalorder %s152, %s153
      %p167 = scmp.eq.s32.totalorder %s49, 7
      %p168 = por %p166, %p167
      %p170 = scmp.ne.s32.totalorder %s153, %s169
      %p171 = scmp.eq.s32.totalorder %s49, 0
      %p172 = por %p170, %p171
      %p173 = scmp.le.s32.totalorder 1, %s43
      %p174 = scmp.lt.s32.totalorder %s43, 9
      %p175 = pnand %p173, %p174
      %p176 = pneg %p175
      // Predicated region
      $region9: #{tpu_custom_call.1} parent=5 // pred_check
        _
      $region10: #{tpu_custom_call.1} parent=5 // pred_check_branch
        %178 = sbr.rel (%p175) target = $region12
      $region11: #{tpu_custom_call.1} parent=5 // pred_region
        %s179 = ssub.s32 %s43, 1
      $region12: #{tpu_custom_call.1} parent=5 // pred_fallthru
        _
      %p180 = scmp.lt.s32.totalorder %s43, 8
      // Predicated region
      $region13: #{tpu_custom_call.1} parent=5 // pred_check
        %p181 = pneg %p180
      $region14: #{tpu_custom_call.1} parent=5 // pred_check_branch
        %183 = sbr.rel (%p181) target = $region16
      $region15: #{tpu_custom_call.1} parent=5 // pred_region
        // Predicated region
        $region17: #{tpu_custom_call.1} parent=15 // pred_check
          %p184 = pneg %p77
        $region18: #{tpu_custom_call.1} parent=15 // pred_check_branch
          %186 = sbr.rel (%p184) target = $region20
        $region19: #{tpu_custom_call.1} parent=15 // pred_region
          %s187 = sand.u32 %s67, 1
          %s188 = scalar_lea.sflag [#allocation11], %s187
          %s189 = sand.u32 %s67, 1
          %s190 = smul.addr %s189, 16
          %s191 = scalar_lea.vmem [#allocation10], %s190
          %s193 = ssub.s32 256, 256
          %194 = vsyncadd %s188, %s193
          %s195 = smul.addr %s50, 8
          %s196 = sadd.s32 %s51, %s195
          %s197 = smul.addr %s196, 128
          %s198 = scalar_lea.hbm %s5, %s197
          %s199 = sshll.u32 %s191, 4
          %s200 = int_to_ptr.vmem [resolvable:$true] %s199
          %205 = dma.hbm_to_vmem [thread:$0]  %s198, 256, %s200, %s188, 512, 128, 8
        $region20: #{tpu_custom_call.1} parent=15 // pred_fallthru
          _
        // Predicated region
        $region21: #{tpu_custom_call.1} parent=15 // pred_check
          %p206 = pneg %p105
        $region22: #{tpu_custom_call.1} parent=15 // pred_check_branch
          %208 = sbr.rel (%p206) target = $region24
        $region23: #{tpu_custom_call.1} parent=15 // pred_region
          %s209 = sand.u32 %s43, 1
          %s210 = scalar_lea.sflag [#allocation14], %s209
          %s211 = sand.u32 %s95, 1
          %s212 = smul.addr %s211, 16
          %s213 = scalar_lea.vmem [#allocation13], %s212
          %s215 = ssub.s32 256, 256
          %216 = vsyncadd %s210, %s215
          %s217 = smul.addr %s50, 8
          %s218 = sadd.s32 %s51, %s217
          %s219 = smul.addr %s218, 128
          %s220 = scalar_lea.hbm %s6, %s219
          %s221 = sshll.u32 %s213, 4
          %s222 = int_to_ptr.vmem [resolvable:$true] %s221
          %227 = dma.hbm_to_vmem [thread:$0]  %s220, 256, %s222, %s210, 512, 128, 8
        $region24: #{tpu_custom_call.1} parent=15 // pred_fallthru
          _
        // Predicated region
        $region25: #{tpu_custom_call.1} parent=15 // pred_check
          %p228 = pneg %p133
        $region26: #{tpu_custom_call.1} parent=15 // pred_check_branch
          %230 = sbr.rel (%p228) target = $region28
        $region27: #{tpu_custom_call.1} parent=15 // pred_region
          %s231 = sand.u32 %s43, 1
          %s232 = scalar_lea.sflag [#allocation14], %s231
          %s233 = sand.u32 %s123, 1
          %s234 = smul.addr %s233, 16
          %s235 = scalar_lea.vmem [#allocation15], %s234
          %s237 = ssub.s32 256, 256
          %238 = vsyncadd %s232, %s237
          %s239 = smul.addr %s50, 8
          %s240 = sadd.s32 %s51, %s239
          %s241 = smul.addr %s240, 128
          %s242 = scalar_lea.hbm %s7, %s241
          %s243 = sshll.u32 %s235, 4
          %s244 = int_to_ptr.vmem [resolvable:$true] %s243
          %249 = dma.hbm_to_vmem [thread:$0]  %s242, 256, %s244, %s232, 512, 128, 8
        $region28: #{tpu_custom_call.1} parent=15 // pred_fallthru
          _
      $region16: #{tpu_custom_call.1} parent=5 // pred_fallthru
        _
      %p250 = scmp.le.s32.totalorder 1, %s43
      %p251 = scmp.lt.s32.totalorder %s43, 9
      %p252 = pnand %p250, %p251
      %p253 = pneg %p252
      // Predicated region
      $region29: #{tpu_custom_call.1} parent=5 // pred_check
        _
      $region30: #{tpu_custom_call.1} parent=5 // pred_check_branch
        %255 = sbr.rel (%p252) target = $region32
      $region31: #{tpu_custom_call.1} parent=5 // pred_region
        %s256 = ssub.s32 %s43, 1
        %s257 = sand.u32 %s70, 1
        %s258 = scalar_lea.sflag [#allocation11], %s257
        %s259 = sand.u32 %s70, 1
        %s260 = smul.addr %s259, 16
        %s261 = scalar_lea.vmem [#allocation10], %s260
        // Predicated region
        $region33: #{tpu_custom_call.1} parent=31 // pred_check
          %p262 = pneg %p83
        $region34: #{tpu_custom_call.1} parent=31 // pred_check_branch
          %264 = sbr.rel (%p262) target = $region36
        $region35: #{tpu_custom_call.1} parent=31 // pred_region
          %265 = dma.done %s258, 256
        $region36: #{tpu_custom_call.1} parent=31 // pred_fallthru
          _
        %s266 = sand.u32 %s48, 1
        %s267 = scalar_lea.sflag [#allocation14], %s266
        %s268 = sand.u32 %s98, 1
        %s269 = smul.addr %s268, 16
        %s270 = scalar_lea.vmem [#allocation13], %s269
        // Predicated region
        $region37: #{tpu_custom_call.1} parent=31 // pred_check
          %p271 = pneg %p111
        $region38: #{tpu_custom_call.1} parent=31 // pred_check_branch
          %273 = sbr.rel (%p271) target = $region40
        $region39: #{tpu_custom_call.1} parent=31 // pred_region
          %274 = dma.done %s267, 256
        $region40: #{tpu_custom_call.1} parent=31 // pred_fallthru
          _
        %s275 = sand.u32 %s48, 1
        %s276 = scalar_lea.sflag [#allocation14], %s275
        %s277 = sand.u32 %s126, 1
        %s278 = smul.addr %s277, 16
        %s279 = scalar_lea.vmem [#allocation15], %s278
        // Predicated region
        $region41: #{tpu_custom_call.1} parent=31 // pred_check
          %p280 = pneg %p139
        $region42: #{tpu_custom_call.1} parent=31 // pred_check_branch
          %282 = sbr.rel (%p280) target = $region44
        $region43: #{tpu_custom_call.1} parent=31 // pred_region
          %283 = dma.done %s276, 256
        $region44: #{tpu_custom_call.1} parent=31 // pred_fallthru
          _
        %s284 = sand.u32 %s70, 1
        %s285 = scalar_lea.sflag [#allocation11], %s284
        %s286 = sand.u32 %s70, 1
        %s287 = smul.addr %s286, 16
        %s288 = scalar_lea.vmem [#allocation10], %s287
        %p289 = pneg %p83
        %p290 = pneg %p80
        %s291 = sand.u32 %s48, 1
        %s292 = scalar_lea.sflag [#allocation14], %s291
        %s293 = sand.u32 %s98, 1
        %s294 = smul.addr %s293, 16
        %s295 = scalar_lea.vmem [#allocation13], %s294
        %p296 = pneg %p111
        %p297 = pneg %p108
        %s298 = sand.u32 %s48, 1
        %s299 = scalar_lea.sflag [#allocation14], %s298
        %s300 = sand.u32 %s126, 1
        %s301 = smul.addr %s300, 16
        %s302 = scalar_lea.vmem [#allocation15], %s301
        %p303 = pneg %p139
        %p304 = pneg %p136
        %p305 = pneg %p165
        %p306 = pneg %p162
        %s307 = sand.u32 %s152, 1
        %s308 = scalar_lea.sflag [#allocation12], %s307
        %s309 = sand.u32 %s152, 1
        %s310 = scalar_lea.vmem [#allocation16], %s309
        %p311 = scmp.eq.s32.totalorder %s53, 0
        // Predicated region
        $region45: #{tpu_custom_call.1} parent=31 // pred_check
          %p312 = pneg %p311
        $region46: #{tpu_custom_call.1} parent=31 // pred_check_branch
          %314 = sbr.rel (%p312) target = $region48
        $region47: #{tpu_custom_call.1} parent=31 // pred_region
          %315 = vst [vmem:[#allocation2] sm:$0xff] 0.0
          %316 = vst [vmem:[#allocation3] sm:$0xff] 0.0
        $region48: #{tpu_custom_call.1} parent=31 // pred_fallthru
          _
        %s317 = sld [smem:[#allocation5 + %s52]]
        %s318 = sld [smem:[#allocation6 + %s52]]
        %v319 = vld [vmem:[%s270] sm:$0xff]
        %s320 = scalar_lea.vmem %s270, 8 [#allocation13]
        %v321 = vld [vmem:[%s320] sm:$0xff]
        %v322 = vld [vmem:[%s261] sm:$0xff]
        %s323 = scalar_lea.vmem %s261, 8 [#allocation10]
        %v324 = vld [vmem:[%s323] sm:$0xff]
        %v325 = vld [vmem:[%s279] sm:$0xff]
        %s326 = scalar_lea.vmem %s279, 8 [#allocation15]
        %v327 = vld [vmem:[%s326] sm:$0xff]
        %vm328 = vcmp.eq.f32.partialorder %v319, 0.0
        %v329 = vsel %vm328, 1, 0
        %v330 = vcvt.s32.f32 %v329
        %vm331 = vcmp.eq.f32.partialorder %v321, 0.0
        %v332 = vsel %vm331, 1, 0
        %v333 = vcvt.s32.f32 %v332
        %v334 = vmul.f32 %v319, 2.0
        %v335 = vsub.f32 %v334, 1.0
        %v336 = vmul.f32 %v321, 2.0
        %v337 = vsub.f32 %v336, 1.0
        %v338 = vmul.f32 %v322, 2.0
        %v339 = vsub.f32 %v338, 1.0
        %v340 = vstv %s317
        %v341 = vmul.f32 %v339, %v340
        %v342 = vstv %s318
        %v343 = vmul.f32 %v325, %v342
        %v344 = vadd.f32 %v341, %v343
        %v345 = vmul.f32 %v344, %v330
        %v346 = vsub.f32 1.0, %v330
        %v347 = vmul.f32 %v335, %v346
        %v348 = vadd.f32 %v345, %v347
        %v349 = vmul.f32 %v324, 2.0
        %v350 = vsub.f32 %v349, 1.0
        %v351 = vmul.f32 %v350, %v340
        %v352 = vmul.f32 %v327, %v342
        %v353 = vadd.f32 %v351, %v352
        %v354 = vmul.f32 %v353, %v333
        %v355 = vsub.f32 1.0, %v333
        %v356 = vmul.f32 %v337, %v355
        %v357 = vadd.f32 %v354, %v356
        %s358 = sld [smem:[#allocation8]]
        %v359 = vstv %s358
        %v360 = vmul.f32 %v335, %v359
        %s361 = sld [smem:[#allocation9]]
        %v362 = vstv %s361
        %v363 = vmul.f32 %v348, %v362
        %v364 = vadd.f32 %v360, %v363
        %s365 = sld [smem:[#allocation8 + $0x1]]
        %v366 = vstv %s365
        %v367 = vmul.f32 %v337, %v366
        %v368 = vadd.f32 %v364, %v367
        %s369 = sld [smem:[#allocation9 + $0x1]]
        %v370 = vstv %s369
        %v371 = vmul.f32 %v357, %v370
        %v372 = vadd.f32 %v368, %v371
        %s373 = smul.u32 %s52, 128
        %s374 = sld [smem:[#allocation7 + %s373]]
        %v375 = vstv %s374
        %v376 = vadd.f32 %v372, %v375
        %v377 = vsub.f32 %v376, %v325
        %v378 = vmul.f32 %v377, %v377
        %v379 = vmul.f32 %v378, %v330
        %s380 = sld [smem:[#allocation8 + $0x80]]
        %v381 = vstv %s380
        %v382 = vmul.f32 %v335, %v381
        %s383 = sld [smem:[#allocation9 + $0x80]]
        %v384 = vstv %s383
        %v385 = vmul.f32 %v348, %v384
        %v386 = vadd.f32 %v382, %v385
        %s387 = sld [smem:[#allocation8 + $0x81]]
        %v388 = vstv %s387
        %v389 = vmul.f32 %v337, %v388
        %v390 = vadd.f32 %v386, %v389
        %s391 = sld [smem:[#allocation9 + $0x81]]
        %v392 = vstv %s391
        %v393 = vmul.f32 %v357, %v392
        %v394 = vadd.f32 %v390, %v393
        %s395 = sadd.s32 %s373, 1
        %s396 = sld [smem:[#allocation7 + %s395]]
        %v397 = vstv %s396
        %v398 = vadd.f32 %v394, %v397
        %v399 = vsub.f32 %v398, %v327
        %v400 = vmul.f32 %v399, %v399
        %v401 = vmul.f32 %v400, %v333
        %v402 = vadd.f32 %v379, %v401
        %v403 = vadd.f32 %v330, %v333
        %v404 = vld [vmem:[#allocation2] sm:$0xff]
        %v405 = vadd.f32 %v404, %v402
        %406 = vst [vmem:[#allocation2] sm:$0xff] %v405
        %v407 = vld [vmem:[#allocation3] sm:$0xff]
        %v408 = vadd.f32 %v407, %v403
        %409 = vst [vmem:[#allocation3] sm:$0xff] %v408
        %p410 = scmp.eq.s32.totalorder %s53, 3
        // Predicated region
        $region49: #{tpu_custom_call.1} parent=31 // pred_check
          %p411 = pneg %p410
        $region50: #{tpu_custom_call.1} parent=31 // pred_check_branch
          %413 = sbr.rel (%p411) target = $region52
        $region51: #{tpu_custom_call.1} parent=31 // pred_region
          %v414 = vld [vmem:[#allocation2] sm:$0xff]
          %415 = vadd.xlane.f32.xlu0 %v414
          %v416 = vpop.xlane.xlu0 %415
          %v417 = vrot.slane %v416, 4
          %v418 = vadd.f32 %v416, %v417
          %v419 = vrot.slane %v418, 2
          %v420 = vadd.f32 %v418, %v419
          %v421 = vrot.slane %v420, 1
          %v422 = vadd.f32 %v420, %v421
          %s423 = vtos %v422
          %v424 = vld [vmem:[#allocation3] sm:$0xff]
          %425 = vadd.xlane.f32.xlu0 %v424
          %v426 = vpop.xlane.xlu0 %425
          %v427 = vrot.slane %v426, 4
          %v428 = vadd.f32 %v426, %v427
          %v429 = vrot.slane %v428, 2
          %v430 = vadd.f32 %v428, %v429
          %v431 = vrot.slane %v430, 1
          %v432 = vadd.f32 %v430, %v431
          %s433 = vtos %v432
          %s434 = sadd.f32 %s433, 1e-08
          %v435 = vstv %s434
          %v436 = vrcp.pop %v435
          %s437 = vtos %v436
          %s438 = smul.f32 %s423, %s437
          %v439 = vstv %s438
          %440 = vst [vmem:[%s310] sm:$0x1] %v439
        $region52: #{tpu_custom_call.1} parent=31 // pred_fallthru
          _
        %s441 = sand.u32 %s152, 1
        %s442 = scalar_lea.sflag [#allocation12], %s441
        %s443 = sand.u32 %s152, 1
        %s444 = scalar_lea.vmem [#allocation16], %s443
        // Predicated region
        $region53: #{tpu_custom_call.1} parent=31 // pred_check
          %p445 = pneg %p162
        $region54: #{tpu_custom_call.1} parent=31 // pred_check_branch
          %447 = sbr.rel (%p445) target = $region56
        $region55: #{tpu_custom_call.1} parent=31 // pred_region
          %s449 = ssub.s32 16, 16
          %450 = vsyncadd %s442, %s449
          %s451 = smul.addr %s52, 16
          %s452 = scalar_lea.hbm %s8, %s451
          %s454 = sshll.u32 %s444, 4
          %s455 = int_to_ptr.vmem [resolvable:$true] %s454
          %457 = dma.vmem_to_hbm [thread:$0]  %s455, 16, %s452, %s442
        $region56: #{tpu_custom_call.1} parent=31 // pred_fallthru
          _
      $region32: #{tpu_custom_call.1} parent=5 // pred_fallthru
        _
      %p458 = scmp.le.s32.totalorder 2, %s43
      // Predicated region
      $region57: #{tpu_custom_call.1} parent=5 // pred_check
        %p459 = pneg %p458
      $region58: #{tpu_custom_call.1} parent=5 // pred_check_branch
        %461 = sbr.rel (%p459) target = $region60
      $region59: #{tpu_custom_call.1} parent=5 // pred_region
        %s462 = ssub.s32 %s43, 2
        // Predicated region
        $region61: #{tpu_custom_call.1} parent=59 // pred_check
          %p463 = pneg %p168
        $region62: #{tpu_custom_call.1} parent=59 // pred_check_branch
          %465 = sbr.rel (%p463) target = $region64
        $region63: #{tpu_custom_call.1} parent=59 // pred_region
          %s466 = sand.u32 %s153, 1
          %s467 = scalar_lea.sflag [#allocation12], %s466
          %s468 = sand.u32 %s153, 1
          %s469 = scalar_lea.vmem [#allocation16], %s468
          %470 = dma.done %s467, 16
        $region64: #{tpu_custom_call.1} parent=59 // pred_fallthru
          _
      $region60: #{tpu_custom_call.1} parent=5 // pred_fallthru
        _
    $region6: #{tpu_custom_call.1} parent=1 // loop_footer
      %s47 = sadd.s32 1, %s43
    $region7: #{tpu_custom_call.1} parent=1 // loop_footer_branch
      %42 = sbr.rel target = $region3
    $region8: #{tpu_custom_call.1} parent=1 // loop_exit
      _
    %471 = vsyncpa [#allocation11], 1
    %s472 = scalar_lea.sflag [#allocation11], 1
    %473 = vsyncpa %s472, 1
    %474 = vsyncpa [#allocation14], 1
    %s475 = scalar_lea.sflag [#allocation14], 1
    %476 = vsyncpa %s475, 1
    %477 = vsyncpa [#allocation12], 1
    %s478 = scalar_lea.sflag [#allocation12], 1
    %479 = vsyncpa %s478, 1

</llo_original>
